<compile_context>
chip_gen: v5e
topology: v5e:2x2
jax: 0.10.0
libtpu: 0.0.40
codegen_flags: <defaults>
</compile_context>

<pallas_src>
import math

import jax
import jax.numpy as jnp
from jax.experimental import pallas as pl
from jax.experimental.pallas import tpu as pltpu


def _make_kernel(B_blk, C_in, C_out, KH, KW, ph, pw, Wp, out_len):
    """Fused conv(3x3, pad=1) + bias + ReLU kernel for fixed (static) geometry."""

    def kernel(x_ref, w_ref, b_ref, o_ref):
        # x_ref: (B_blk, C_in, L)        padded + flattened NCHW slab (lane-dense)
        # w_ref: (C_out, KH*KW*C_in)     fused-GEMM weights, rows match slab order
        # b_ref: (C_out, 1)              bias column (broadcast along lanes)
        # o_ref: (B_blk, C_out, out_len) wide-frame output, out_len % 128 == 0
        w = w_ref[...]            # hoisted: resident across the inner batch loop
        b = b_ref[...]

        for bi in range(B_blk):   # static, small unrolled loop over images in the block
            x = x_ref[bi]         # (C_in, L) -- one VMEM load, all taps reuse it

            pieces = []
            for kh in range(KH):
                # Center-column tap (kw == pw) slice of the padded row band for this kh.
                start = (kh + ph) * Wp
                base = x[:, start:start + out_len]            # (C_in, out_len)
                # kw = 0 / kw = 2 taps are +/-1 lane-rolls of the center slice; the one
                # wrapped element per row lands only in a dropped padded output column.
                left = pltpu.roll(base, 1, axis=1)             # reads column w-1
                right = pltpu.roll(base, out_len - 1, axis=1)  # reads column w+1 (== roll -1)
                pieces += [left, base, right]                  # order: kw = 0, 1, 2

            # (KH*KW*C_in, out_len) stacked slab; row block t*C_in:(t+1)*C_in == tap t.
            slab = jnp.concatenate(pieces, axis=0)
            # Single MXU GEMM with contraction = KH*KW*C_in instead of 9 tiny dots.
            y = jnp.dot(w, slab, preferred_element_type=jnp.float32)   # (C_out, out_len)
            y = y + b
            o_ref[bi] = jnp.maximum(y, 0.0).astype(o_ref.dtype)

    return kernel


@jax.jit
def ann_layer_conv_relu(x_nchw, weight_oihw, bias):
    """ReLU(Conv2d(x, weight, bias, stride=1, padding=1)) via a fused Pallas kernel.

    x_nchw:      (N, C_in, H, W)       float32
    weight_oihw: (C_out, C_in, KH, KW) with KH = KW = 3
    bias:        (C_out,)
    returns:     (N, C_out, H, W)      float32
    """
    N, C_in, H, W = x_nchw.shape
    C_out, _, KH, KW = weight_oihw.shape
    ph, pw = KH // 2, KW // 2                     # same-padding amounts (1, 1)

    # Lane-aligned wide frame: round the padded width up so each image's output length
    # H * Wp is a multiple of 128 -> unmasked vector stores (biggest measured lever).
    lane = 128
    step = lane // math.gcd(H, lane)
    Wp = ((W + 2 * pw + step - 1) // step) * step
    out_len = H * Wp

    # Single zero-pad pass, NCHW preserved. Height padded by 2*ph on each side so every
    # tap's flat shift stays in-bounds (max read = (H+3)*Wp < L = (H+4)*Wp); width padded
    # to Wp (pw on the left, rest on the right).
    x_pad = jnp.pad(x_nchw, ((0, 0), (0, 0), (2 * ph, 2 * ph), (pw, Wp - W - pw)))
    L = x_pad.shape[2] * Wp
    x_flat = x_pad.reshape(N, C_in, L)            # trailing-dim merge: free, stays NCHW

    # Fused-GEMM weight layout (C_out, KH*KW*C_in); column (kh*KW + kw)*C_in + ci matches
    # slab row order (kh major, kw middle, ci minor).
    w_gemm = jnp.transpose(weight_oihw, (0, 2, 3, 1)).reshape(C_out, KH * KW * C_in)
    b_col = bias.reshape(C_out, 1)

    # Batch blocking: keep the per-step footprint inside a v7x-safe VMEM budget
    # (double-buffered ~2x this) while keeping the grid length >= 2 for megacore.
    per_image_bytes = 4 * (C_in * L + C_out * out_len)
    vmem_budget = 12 << 20                        # single-buffer budget (v7x: 64 MiB phys)
    B_blk = int(min(N, max(1, vmem_budget // per_image_bytes), max(1, N // 2)))
    while N % B_blk:                              # keep the grid exact (no remainder step)
        B_blk -= 1
    grid_len = N // B_blk

    kernel = _make_kernel(B_blk, C_in, C_out, KH, KW, ph, pw, Wp, out_len)

    flops = 2 * N * C_out * KH * KW * C_in * H * W
    bytes_accessed = 4 * (N * C_in * L + C_out * KH * KW * C_in + C_out + N * C_out * out_len)

    out_wide = pl.pallas_call(
        kernel,
        out_shape=jax.ShapeDtypeStruct((N, C_out, out_len), jnp.float32),
        grid_spec=pltpu.PrefetchScalarGridSpec(
            num_scalar_prefetch=0,
            grid=(grid_len,),                                  # >= 2 steps for v7x megacore
            in_specs=[
                pl.BlockSpec((B_blk, C_in, L), lambda n: (n, 0, 0)),           # activations
                pl.BlockSpec((C_out, KH * KW * C_in), lambda n: (0, 0)),       # resident weights
                pl.BlockSpec((C_out, 1), lambda n: (0, 0)),                    # bias
            ],
            out_specs=pl.BlockSpec((B_blk, C_out, out_len), lambda n: (n, 0, 0)),
        ),
        compiler_params=pltpu.CompilerParams(
            dimension_semantics=("parallel",),                 # megacore-shard over batch
            vmem_limit_bytes=32 * 1024 * 1024,                 # raise v5e's 16 MiB default
        ),
        cost_estimate=pl.CostEstimate(
            flops=flops, transcendentals=0, bytes_accessed=bytes_accessed),
    )(x_flat, w_gemm, b_col)

    # Already NCHW-ordered: drop the width-padding columns (garbage by construction).
    out = out_wide.reshape(N, C_out, H, Wp)[:, :, :, pw:pw + W]
    return out


def _reference(x_nchw, weight_oihw, bias):
    """Pure-JAX reference: Conv2d(pad=1) + ReLU in NCHW, matching PyTorch."""
    y = jax.lax.conv_general_dilated(
        x_nchw, weight_oihw,
        window_strides=(1, 1), padding=((1, 1), (1, 1)),
        dimension_numbers=("NCHW", "OIHW", "NCHW"),
    )
    y = y + bias.reshape(1, -1, 1, 1)
    return jnp.maximum(y, 0.0)


if __name__ == "__main__":
    # Small deterministic instantiation: batch=2, C_in=4, H=W=16, C_out=8.
    N, C_in, H, W, C_out, K = 2, 4, 16, 16, 8, 3

    key = jax.random.PRNGKey(0)
    kx, kw, kb = jax.random.split(key, 3)

    x = jax.random.normal(kx, (N, C_in, H, W), dtype=jnp.float32)

    # Deterministic "PyTorch-like" init: uniform(-1/sqrt(fan_in), +1/sqrt(fan_in)).
    fan_in = C_in * K * K
    bound = 1.0 / (fan_in ** 0.5)
    weight = jax.random.uniform(kw, (C_out, C_in, K, K), jnp.float32, -bound, bound)
    bias = jax.random.uniform(kb, (C_out,), jnp.float32, -bound, bound)

    out = ann_layer_conv_relu(x, weight, bias)
    out = jax.block_until_ready(out)

    ref = _reference(x, weight, bias)
    assert out.shape == (N, C_out, H, W)
    assert jnp.allclose(out, ref, atol=1e-5, rtol=1e-5), "mismatch vs reference"

    print("KERNEL_OK")
</pallas_src>

<mosaic_0001>
module attributes {stable_mosaic.version = 11 : i64} {
  func.func @kernel(%arg0: i32, %arg1: memref<1x4x480xf32, #tpu.memory_space<vmem>>, %arg2: memref<8x36xf32, #tpu.memory_space<vmem>>, %arg3: memref<8x1xf32, #tpu.memory_space<vmem>>, %arg4: memref<1x8x384xf32, #tpu.memory_space<vmem>>) attributes {dimension_semantics = [#tpu.dimension_semantics<parallel>], iteration_bounds = array<i64: 2>, scalar_prefetch = 0 : i64, scratch_operands = 0 : i64, tpu.core_type = #tpu.core_type<tc>, window_params = [{transform_indices = @transform_0, window_bounds = array<i64: 1, 4, 480>}, {pipeline_mode = #tpu.pipeline_mode<synchronous>, transform_indices = @transform_1, window_bounds = array<i64: 8, 36>}, {pipeline_mode = #tpu.pipeline_mode<synchronous>, transform_indices = @transform_2, window_bounds = array<i64: 8, 1>}, {transform_indices = @transform_3, window_bounds = array<i64: 1, 8, 384>}]} {
    %c0 = arith.constant 0 : index
    %c0_0 = arith.constant 0 : index
    %0 = vector.load %arg2[%c0, %c0_0] : memref<8x36xf32, #tpu.memory_space<vmem>>, vector<8x36xf32>
    %c0_1 = arith.constant 0 : index
    %c0_2 = arith.constant 0 : index
    %1 = vector.load %arg3[%c0_1, %c0_2] : memref<8x1xf32, #tpu.memory_space<vmem>>, vector<8x1xf32>
    %c0_3 = arith.constant 0 : index
    %c0_4 = arith.constant 0 : index
    %c0_5 = arith.constant 0 : index
    %2 = vector.load %arg1[%c0_3, %c0_4, %c0_5] : memref<1x4x480xf32, #tpu.memory_space<vmem>>, vector<1x4x480xf32>
    %3 = vector.shape_cast %2 : vector<1x4x480xf32> to vector<4x480xf32>
    %4 = vector.extract_strided_slice %3 {offsets = [0, 24], sizes = [4, 384], strides = [1, 1]} : vector<4x480xf32> to vector<4x384xf32>
    %c1_i32 = arith.constant 1 : i32
    %5 = tpu.dynamic_rotate %4 by %c1_i32 dim 1 : vector<4x384xf32>, i32 -> vector<4x384xf32>
    %c383_i32 = arith.constant 383 : i32
    %6 = tpu.dynamic_rotate %4 by %c383_i32 dim 1 : vector<4x384xf32>, i32 -> vector<4x384xf32>
    %7 = vector.extract_strided_slice %3 {offsets = [0, 48], sizes = [4, 384], strides = [1, 1]} : vector<4x480xf32> to vector<4x384xf32>
    %c1_i32_6 = arith.constant 1 : i32
    %8 = tpu.dynamic_rotate %7 by %c1_i32_6 dim 1 : vector<4x384xf32>, i32 -> vector<4x384xf32>
    %c383_i32_7 = arith.constant 383 : i32
    %9 = tpu.dynamic_rotate %7 by %c383_i32_7 dim 1 : vector<4x384xf32>, i32 -> vector<4x384xf32>
    %10 = vector.extract_strided_slice %3 {offsets = [0, 72], sizes = [4, 384], strides = [1, 1]} : vector<4x480xf32> to vector<4x384xf32>
    %c1_i32_8 = arith.constant 1 : i32
    %11 = tpu.dynamic_rotate %10 by %c1_i32_8 dim 1 : vector<4x384xf32>, i32 -> vector<4x384xf32>
    %c383_i32_9 = arith.constant 383 : i32
    %12 = tpu.dynamic_rotate %10 by %c383_i32_9 dim 1 : vector<4x384xf32>, i32 -> vector<4x384xf32>
    %13 = tpu.concatenate %5, %4, %6, %8, %7, %9, %11, %10, %12 in 0 : vector<4x384xf32>, vector<4x384xf32>, vector<4x384xf32>, vector<4x384xf32>, vector<4x384xf32>, vector<4x384xf32>, vector<4x384xf32>, vector<4x384xf32>, vector<4x384xf32> -> vector<36x384xf32>
    %cst = arith.constant dense<0.000000e+00> : vector<8x384xf32>
    %14 = tpu.matmul %0, %13, %cst {dimension_numbers = #tpu.dot_dimension_numbers<[1], [0], [0], [1], [0, 0, 1, 1], [], []>} : vector<8x36xf32>, vector<36x384xf32>, vector<8x384xf32> -> vector<8x384xf32>
    %15 = vector.broadcast %1 : vector<8x1xf32> to vector<8x384xf32>
    %16 = arith.addf %14, %15 : vector<8x384xf32>
    %cst_10 = arith.constant 0.000000e+00 : f32
    %17 = vector.broadcast %cst_10 : f32 to vector<8x384xf32>
    %18 = arith.maximumf %16, %17 : vector<8x384xf32>
    %c0_11 = arith.constant 0 : index
    %c0_12 = arith.constant 0 : index
    %c0_13 = arith.constant 0 : index
    %19 = vector.load %arg4[%c0_11, %c0_12, %c0_13] : memref<1x8x384xf32, #tpu.memory_space<vmem>>, vector<1x8x384xf32>
    %20 = vector.shape_cast %19 : vector<1x8x384xf32> to vector<8x384xf32>
    %21 = vector.shape_cast %18 : vector<8x384xf32> to vector<1x8x384xf32>
    tpu.vector_store %arg4[%c0_11, %c0_12, %c0_13], %21 {strides = array<i32>} : memref<1x8x384xf32, #tpu.memory_space<vmem>>, vector<1x8x384xf32>,
    return
  }
  func.func @transform_0(%arg0: i32) -> (i32, i32, i32) {
    %c0_i32 = arith.constant 0 : i32
    %c0_i32_0 = arith.constant 0 : i32
    %c0_i32_1 = arith.constant 0 : i32
    return %arg0, %c0_i32, %c0_i32_0 : i32, i32, i32
  }
  func.func @transform_1(%arg0: i32) -> (i32, i32) {
    %c0_i32 = arith.constant 0 : i32
    %c0_i32_0 = arith.constant 0 : i32
    %c0_i32_1 = arith.constant 0 : i32
    return %c0_i32, %c0_i32_0 : i32, i32
  }
  func.func @transform_2(%arg0: i32) -> (i32, i32) {
    %c0_i32 = arith.constant 0 : i32
    %c0_i32_0 = arith.constant 0 : i32
    %c0_i32_1 = arith.constant 0 : i32
    return %c0_i32, %c0_i32_0 : i32, i32
  }
  func.func @transform_3(%arg0: i32) -> (i32, i32, i32) {
    %c0_i32 = arith.constant 0 : i32
    %c0_i32_0 = arith.constant 0 : i32
    %c0_i32_1 = arith.constant 0 : i32
    return %arg0, %c0_i32, %c0_i32_0 : i32, i32, i32
  }
}

</mosaic_0001>

<llo_original>
// kernel: ann_layer_conv_relu.1
$region0: #{ann_layer_conv_relu.1}
  #allocation0 [shape = 'u32[]', space=smem, size = 0x4, offset = 0x4, fixed_abs, tag = 'smem constant byte address 0x4 - core index']
  #allocation1 [shape = 'u32[72,128]{1,0:T(1,128)}', space=vmem, size = 0x9000, scoped, tag = 'internal scratch']
  %s0 = inlined_call_operand.vmem [shape: f32[2,4,480], index: 0, kind: input, shape index: {}]
  %s1 = inlined_call_operand.vmem [shape: f32[8,36], index: 1, kind: input, shape index: {}]
  %s2 = inlined_call_operand.vmem [shape: f32[8,1], index: 2, kind: input, shape index: {}]
  %s3 = inlined_call_operand.vmem [shape: f32[2,8,384], index: 3, kind: output, shape index: {}]
  %s4 = sld [smem:[#allocation0]]
  $region45: #{ann_layer_conv_relu.1} parent=0
    _
  %s6 = ssub.s32 1, %s4
  %s7 = scalar_select 0, %s6, %s4
  loop: start=0, step=1, limit=4
  $region2: #{ann_layer_conv_relu.1} parent=0 // loop_pre_header
    _
  $region3: #{ann_layer_conv_relu.1} parent=0 // loop_header
    %s9 = sphi 0, %s13
    %p10 = scmp.ge.s32.totalorder %s9, 4
    %s19 = sphi 0, %s21
    %s22 = sphi 0, %s19
    %s23 = sphi 0, %s22
    %s39 = sphi 0, %s23
    %s43 = sphi 0, %s43
    %s45 = sphi 0, %s43
    %s46 = sphi 0, %s45
    %s60 = sphi 0, %s46
    %s64 = sphi 0, %s64
    %s66 = sphi 0, %s64
    %s67 = sphi 0, %s66
    %s81 = sphi 0, %s67
    %s87 = sphi 0, %s89
    %s90 = sphi 0, %s87
    %s91 = sphi 0, %s90
    %s107 = sphi 0, %s91
  $region4: #{ann_layer_conv_relu.1} parent=0 // loop_header_branch
    %12 = sbr.rel (%p10) target = $region8
  $region5: #{ann_layer_conv_relu.1} parent=0 // loop_body
    %s14 = ssub.s32 %s9, 1
    %s15 = ssub.s32 %s9, 2
    %s16 = sadd.s32 %s9, 1
    %s17 = ssub.s32 %s9, %s16
    %p18 = scmp.eq.s32.totalorder %s17, 0
    %s20 = sadd.s32 %s19, 1
    %s21 = scalar_select %p18, %s19, %s20
    %p24 = pneg %p18
    %p25 = scmp.eq.s32.totalorder %s9, 1
    %p26 = por %p24, %p25
    %p27 = scmp.ne.s32.totalorder %s19, %s22
    %p28 = scmp.eq.s32.totalorder %s9, 0
    %p29 = por %p27, %p28
    %p30 = scmp.ne.s32.totalorder %s19, %s22
    %p31 = scmp.eq.s32.totalorder %s14, 1
    %p32 = por %p30, %p31
    %p33 = scmp.ne.s32.totalorder %s22, %s23
    %p34 = scmp.eq.s32.totalorder %s14, 0
    %p35 = por %p33, %p34
    %p36 = scmp.ne.s32.totalorder %s22, %s23
    %p37 = scmp.eq.s32.totalorder %s15, 1
    %p38 = por %p36, %p37
    %p40 = scmp.ne.s32.totalorder %s23, %s39
    %p41 = scmp.eq.s32.totalorder %s15, 0
    %p42 = por %p40, %p41
    %s44 = sadd.s32 %s43, 1
    %p47 = scmp.eq.s32.totalorder %s9, 1
    %p48 = scmp.ne.s32.totalorder %s43, %s45
    %p49 = scmp.eq.s32.totalorder %s9, 0
    %p50 = por %p48, %p49
    %p51 = scmp.ne.s32.totalorder %s43, %s45
    %p52 = scmp.eq.s32.totalorder %s14, 1
    %p53 = por %p51, %p52
    %p54 = scmp.ne.s32.totalorder %s45, %s46
    %p55 = scmp.eq.s32.totalorder %s14, 0
    %p56 = por %p54, %p55
    %p57 = scmp.ne.s32.totalorder %s45, %s46
    %p58 = scmp.eq.s32.totalorder %s15, 1
    %p59 = por %p57, %p58
    %p61 = scmp.ne.s32.totalorder %s46, %s60
    %p62 = scmp.eq.s32.totalorder %s15, 0
    %p63 = por %p61, %p62
    %s65 = sadd.s32 %s64, 1
    %p68 = scmp.eq.s32.totalorder %s9, 1
    %p69 = scmp.ne.s32.totalorder %s64, %s66
    %p70 = scmp.eq.s32.totalorder %s9, 0
    %p71 = por %p69, %p70
    %p72 = scmp.ne.s32.totalorder %s64, %s66
    %p73 = scmp.eq.s32.totalorder %s14, 1
    %p74 = por %p72, %p73
    %p75 = scmp.ne.s32.totalorder %s66, %s67
    %p76 = scmp.eq.s32.totalorder %s14, 0
    %p77 = por %p75, %p76
    %p78 = scmp.ne.s32.totalorder %s66, %s67
    %p79 = scmp.eq.s32.totalorder %s15, 1
    %p80 = por %p78, %p79
    %p82 = scmp.ne.s32.totalorder %s67, %s81
    %p83 = scmp.eq.s32.totalorder %s15, 0
    %p84 = por %p82, %p83
    %s85 = ssub.s32 %s9, %s16
    %p86 = scmp.eq.s32.totalorder %s85, 0
    %s88 = sadd.s32 %s87, 1
    %s89 = scalar_select %p86, %s87, %s88
    %p92 = pneg %p86
    %p93 = scmp.eq.s32.totalorder %s9, 1
    %p94 = por %p92, %p93
    %p95 = scmp.ne.s32.totalorder %s87, %s90
    %p96 = scmp.eq.s32.totalorder %s9, 0
    %p97 = por %p95, %p96
    %p98 = scmp.ne.s32.totalorder %s87, %s90
    %p99 = scmp.eq.s32.totalorder %s14, 1
    %p100 = por %p98, %p99
    %p101 = scmp.ne.s32.totalorder %s90, %s91
    %p102 = scmp.eq.s32.totalorder %s14, 0
    %p103 = por %p101, %p102
    %p104 = scmp.ne.s32.totalorder %s90, %s91
    %p105 = scmp.eq.s32.totalorder %s15, 1
    %p106 = por %p104, %p105
    %p108 = scmp.ne.s32.totalorder %s91, %s107
    %p109 = scmp.eq.s32.totalorder %s15, 0
    %p110 = por %p108, %p109
    %p111 = scmp.le.s32.totalorder 1, %s9
    %p112 = scmp.lt.s32.totalorder %s9, 3
    %p113 = pnand %p111, %p112
    %p114 = pneg %p113
    // Predicated region
    $region9: #{ann_layer_conv_relu.1} parent=5 // pred_check
      _
    $region10: #{ann_layer_conv_relu.1} parent=5 // pred_check_branch
      %116 = sbr.rel (%p113) target = $region12
    $region11: #{ann_layer_conv_relu.1} parent=5 // pred_region
      %s117 = ssub.s32 %s9, 1
      // Predicated region
      $region13: #{ann_layer_conv_relu.1} parent=11 // pred_check
        %p118 = pneg %p56
      $region14: #{ann_layer_conv_relu.1} parent=11 // pred_check_branch
        %120 = sbr.rel (%p118) target = $region16
      $region15: #{ann_layer_conv_relu.1} parent=11 // pred_region
        _
      $region16: #{ann_layer_conv_relu.1} parent=11 // pred_fallthru
        _
      // Predicated region
      $region17: #{ann_layer_conv_relu.1} parent=11 // pred_check
        %p121 = pneg %p77
      $region18: #{ann_layer_conv_relu.1} parent=11 // pred_check_branch
        %123 = sbr.rel (%p121) target = $region20
      $region19: #{ann_layer_conv_relu.1} parent=11 // pred_region
        _
      $region20: #{ann_layer_conv_relu.1} parent=11 // pred_fallthru
        _
    $region12: #{ann_layer_conv_relu.1} parent=5 // pred_fallthru
      _
    %p124 = scmp.lt.s32.totalorder %s9, 2
    // Predicated region
    $region21: #{ann_layer_conv_relu.1} parent=5 // pred_check
      %p125 = pneg %p124
    $region22: #{ann_layer_conv_relu.1} parent=5 // pred_check_branch
      %127 = sbr.rel (%p125) target = $region24
    $region23: #{ann_layer_conv_relu.1} parent=5 // pred_region
      // Predicated region
      $region25: #{ann_layer_conv_relu.1} parent=23 // pred_check
        %p128 = pneg %p29
      $region26: #{ann_layer_conv_relu.1} parent=23 // pred_check_branch
        %130 = sbr.rel (%p128) target = $region28
      $region27: #{ann_layer_conv_relu.1} parent=23 // pred_region
        %p131 = scmp.lt.s32.totalorder %s9, 1
        %s132 = scalar_select %p131, %s9, 1
        %s133 = smul.addr %s132, 4
        %s134 = smul.addr %s133, 4
        %s135 = scalar_lea.vmem %s0, %s134
      $region28: #{ann_layer_conv_relu.1} parent=23 // pred_fallthru
        _
    $region24: #{ann_layer_conv_relu.1} parent=5 // pred_fallthru
      _
    %p136 = scmp.le.s32.totalorder 1, %s9
    %p137 = scmp.lt.s32.totalorder %s9, 3
    %p138 = pnand %p136, %p137
    %p139 = pneg %p138
    // Predicated region
    $region29: #{ann_layer_conv_relu.1} parent=5 // pred_check
      _
    $region30: #{ann_layer_conv_relu.1} parent=5 // pred_check_branch
      %141 = sbr.rel (%p138) target = $region32
    $region31: #{ann_layer_conv_relu.1} parent=5 // pred_region
      %s142 = ssub.s32 %s9, 1
      %p143 = scmp.lt.s32.totalorder %s14, 1
      %s144 = scalar_select %p143, %s14, 1
      %s145 = smul.addr %s144, 4
      %s146 = smul.addr %s145, 4
      %s147 = scalar_lea.vmem %s0, %s146
      %p148 = pneg %p35
      %p149 = pneg %p32
      %p150 = pneg %p56
      %p151 = pneg %p53
      %p152 = pneg %p77
      %p153 = pneg %p74
      %p154 = pneg %p103
      %p155 = pneg %p100
      %p156 = scmp.lt.s32.totalorder %s14, 1
      %s157 = scalar_select %p156, %s14, 1
      %s158 = smul.addr %s157, 3
      %s159 = smul.addr %s158, 8
      %s160 = scalar_lea.vmem %s3, %s159
      %p161 = scmp.lt.s32.totalorder %s14, 1
      %s162 = scalar_select %p161, %s14, 1
      %s163 = smul.addr %s162, 4
      %s164 = smul.addr %s163, 4
      %s165 = scalar_lea.vmem %s0, %s164
      %p166 = scmp.lt.s32.totalorder %s14, 1
      %s167 = scalar_select %p166, %s14, 1
      %s168 = smul.addr %s167, 3
      %s169 = smul.addr %s168, 8
      %s170 = scalar_lea.vmem %s3, %s169
      %v171 = vld [vmem:[%s1] sm:$0xff]
      %v172 = vld [vmem:[%s2] sm:$0xff]
      %v173 = vld [vmem:[%s165] sm:$0xff]
      %v174 = vld [vmem:[%s165 + $0x8] sm:$0xff]
      %177 = vst [vmem:[#allocation1] ss:$2 sm:$0xff] %v173
      %s178 = scalar_lea.vmem [#allocation1], 16
      %179 = vst [vmem:[%s178] ss:$2 sm:$0xff] %v174
      %v180 = vld.sshfl [vmem:[#allocation1] sm:$0xff pattern:$0x75316420]
      %v181 = vld.sshfl [vmem:[#allocation1 + $0x8] sm:$0xff pattern:$0x75316420]
      %v182 = vld.sshfl [vmem:[#allocation1 + $0x10] sm:$0xff pattern:$0x75316420]
      %v183 = vld.sshfl [vmem:[#allocation1 + $0x18] sm:$0xff pattern:$0x75316420]
      %184 = vrot.lane.b32.xlu0 %v180, 104
      %v185 = vpop.permute.xlu0 %184
      %186 = vrot.lane.b32.xlu0 %v181, 104
      %v187 = vpop.permute.xlu0 %186
      %188 = vrot.lane.b32.xlu0 %v182, 104
      %v189 = vpop.permute.xlu0 %188
      %190 = vrot.lane.b32.xlu0 %v183, 104
      %v191 = vpop.permute.xlu0 %190
      %vm192 = vcmask 850944
      %v193 = vsel %vm192, %v185, %v187
      %v194 = vsel %vm192, %v187, %v189
      %v195 = vsel %vm192, %v189, %v191
      %199 = vrot.lane.b32.xlu0 %v193, 1
      %v200 = vpop.permute.xlu0 %199
      %201 = vrot.lane.b32.xlu0 %v194, 1
      %v202 = vpop.permute.xlu0 %201
      %203 = vrot.lane.b32.xlu0 %v195, 1
      %v204 = vpop.permute.xlu0 %203
      %v205 = vlaneseq
      %v206 = vand.u32 %v205, 127
      %vm207 = vcmp.lt.s32.totalorder %v206, 1
      %v208 = vsel %vm207, %v202, %v204
      %v209 = vsel %vm207, %v200, %v202
      %v210 = vsel %vm207, %v204, %v200
      %211 = vst [vmem:[#allocation1] ss:$2 sm:$0xff] %v173
      %s212 = scalar_lea.vmem [#allocation1], 16
      %213 = vst [vmem:[%s212] ss:$2 sm:$0xff] %v174
      %v214 = vld.sshfl [vmem:[#allocation1] sm:$0xff pattern:$0x75316420]
      %v215 = vld.sshfl [vmem:[#allocation1 + $0x8] sm:$0xff pattern:$0x75316420]
      %v216 = vld.sshfl [vmem:[#allocation1 + $0x10] sm:$0xff pattern:$0x75316420]
      %v217 = vld.sshfl [vmem:[#allocation1 + $0x18] sm:$0xff pattern:$0x75316420]
      %218 = vrot.lane.b32.xlu0 %v214, 104
      %v219 = vpop.permute.xlu0 %218
      %220 = vrot.lane.b32.xlu0 %v215, 104
      %v221 = vpop.permute.xlu0 %220
      %222 = vrot.lane.b32.xlu0 %v216, 104
      %v223 = vpop.permute.xlu0 %222
      %224 = vrot.lane.b32.xlu0 %v217, 104
      %v225 = vpop.permute.xlu0 %224
      %v226 = vsel %vm192, %v219, %v221
      %v227 = vsel %vm192, %v221, %v223
      %v228 = vsel %vm192, %v223, %v225
      %232 = vrot.lane.b32.xlu0 %v226, 127
      %v233 = vpop.permute.xlu0 %232
      %234 = vrot.lane.b32.xlu0 %v227, 127
      %v235 = vpop.permute.xlu0 %234
      %236 = vrot.lane.b32.xlu0 %v228, 127
      %v237 = vpop.permute.xlu0 %236
      %vm238 = vcmp.lt.s32.totalorder %v206, 127
      %v239 = vsel %vm238, %v235, %v237
      %v240 = vsel %vm238, %v233, %v235
      %v241 = vsel %vm238, %v237, %v233
      %242 = vst [vmem:[#allocation1] ss:$2 sm:$0xff] %v173
      %s243 = scalar_lea.vmem [#allocation1], 16
      %244 = vst [vmem:[%s243] ss:$2 sm:$0xff] %v174
      %v245 = vld.sshfl [vmem:[#allocation1] sm:$0xff pattern:$0x75316420]
      %v246 = vld.sshfl [vmem:[#allocation1 + $0x8] sm:$0xff pattern:$0x75316420]
      %v247 = vld.sshfl [vmem:[#allocation1 + $0x10] sm:$0xff pattern:$0x75316420]
      %v248 = vld.sshfl [vmem:[#allocation1 + $0x18] sm:$0xff pattern:$0x75316420]
      %249 = vrot.lane.b32.xlu0 %v245, 80
      %v250 = vpop.permute.xlu0 %249
      %251 = vrot.lane.b32.xlu0 %v246, 80
      %v252 = vpop.permute.xlu0 %251
      %253 = vrot.lane.b32.xlu0 %v247, 80
      %v254 = vpop.permute.xlu0 %253
      %255 = vrot.lane.b32.xlu0 %v248, 80
      %v256 = vpop.permute.xlu0 %255
      %vm257 = vcmask 654336
      %v258 = vsel %vm257, %v250, %v252
      %v259 = vsel %vm257, %v252, %v254
      %v260 = vsel %vm257, %v254, %v256
      %264 = vrot.lane.b32.xlu0 %v258, 1
      %v265 = vpop.permute.xlu0 %264
      %266 = vrot.lane.b32.xlu0 %v259, 1
      %v267 = vpop.permute.xlu0 %266
      %268 = vrot.lane.b32.xlu0 %v260, 1
      %v269 = vpop.permute.xlu0 %268
      %v270 = vsel %vm207, %v267, %v269
      %v271 = vsel %vm207, %v265, %v267
      %v272 = vsel %vm207, %v269, %v265
      %273 = vst [vmem:[#allocation1] ss:$2 sm:$0xff] %v173
      %s274 = scalar_lea.vmem [#allocation1], 16
      %275 = vst [vmem:[%s274] ss:$2 sm:$0xff] %v174
      %v276 = vld.sshfl [vmem:[#allocation1] sm:$0xff pattern:$0x75316420]
      %v277 = vld.sshfl [vmem:[#allocation1 + $0x8] sm:$0xff pattern:$0x75316420]
      %v278 = vld.sshfl [vmem:[#allocation1 + $0x10] sm:$0xff pattern:$0x75316420]
      %v279 = vld.sshfl [vmem:[#allocation1 + $0x18] sm:$0xff pattern:$0x75316420]
      %280 = vrot.lane.b32.xlu0 %v276, 80
      %v281 = vpop.permute.xlu0 %280
      %282 = vrot.lane.b32.xlu0 %v277, 80
      %v283 = vpop.permute.xlu0 %282
      %284 = vrot.lane.b32.xlu0 %v278, 80
      %v285 = vpop.permute.xlu0 %284
      %286 = vrot.lane.b32.xlu0 %v279, 80
      %v287 = vpop.permute.xlu0 %286
      %v288 = vsel %vm257, %v281, %v283
      %v289 = vsel %vm257, %v283, %v285
      %v290 = vsel %vm257, %v285, %v287
      %294 = vrot.lane.b32.xlu0 %v288, 127
      %v295 = vpop.permute.xlu0 %294
      %296 = vrot.lane.b32.xlu0 %v289, 127
      %v297 = vpop.permute.xlu0 %296
      %298 = vrot.lane.b32.xlu0 %v290, 127
      %v299 = vpop.permute.xlu0 %298
      %v300 = vsel %vm238, %v297, %v299
      %v301 = vsel %vm238, %v295, %v297
      %v302 = vsel %vm238, %v299, %v295
      %303 = vst [vmem:[#allocation1] ss:$2 sm:$0xff] %v173
      %s304 = scalar_lea.vmem [#allocation1], 16
      %305 = vst [vmem:[%s304] ss:$2 sm:$0xff] %v174
      %v306 = vld.sshfl [vmem:[#allocation1] sm:$0xff pattern:$0x75316420]
      %v307 = vld.sshfl [vmem:[#allocation1 + $0x8] sm:$0xff pattern:$0x75316420]
      %v308 = vld.sshfl [vmem:[#allocation1 + $0x10] sm:$0xff pattern:$0x75316420]
      %v309 = vld.sshfl [vmem:[#allocation1 + $0x18] sm:$0xff pattern:$0x75316420]
      %310 = vrot.lane.b32.xlu0 %v306, 56
      %v311 = vpop.permute.xlu0 %310
      %312 = vrot.lane.b32.xlu0 %v307, 56
      %v313 = vpop.permute.xlu0 %312
      %314 = vrot.lane.b32.xlu0 %v308, 56
      %v315 = vpop.permute.xlu0 %314
      %316 = vrot.lane.b32.xlu0 %v309, 56
      %v317 = vpop.permute.xlu0 %316
      %vm318 = vcmask 457728
      %v319 = vsel %vm318, %v311, %v313
      %v320 = vsel %vm318, %v313, %v315
      %v321 = vsel %vm318, %v315, %v317
      %325 = vrot.lane.b32.xlu0 %v319, 1
      %v326 = vpop.permute.xlu0 %325
      %327 = vrot.lane.b32.xlu0 %v320, 1
      %v328 = vpop.permute.xlu0 %327
      %329 = vrot.lane.b32.xlu0 %v321, 1
      %v330 = vpop.permute.xlu0 %329
      %v331 = vsel %vm207, %v328, %v330
      %v332 = vsel %vm207, %v326, %v328
      %v333 = vsel %vm207, %v330, %v326
      %334 = vst [vmem:[#allocation1] ss:$2 sm:$0xff] %v173
      %s335 = scalar_lea.vmem [#allocation1], 16
      %336 = vst [vmem:[%s335] ss:$2 sm:$0xff] %v174
      %v337 = vld.sshfl [vmem:[#allocation1] sm:$0xff pattern:$0x75316420]
      %v338 = vld.sshfl [vmem:[#allocation1 + $0x8] sm:$0xff pattern:$0x75316420]
      %v339 = vld.sshfl [vmem:[#allocation1 + $0x10] sm:$0xff pattern:$0x75316420]
      %v340 = vld.sshfl [vmem:[#allocation1 + $0x18] sm:$0xff pattern:$0x75316420]
      %341 = vrot.lane.b32.xlu0 %v337, 56
      %v342 = vpop.permute.xlu0 %341
      %343 = vrot.lane.b32.xlu0 %v338, 56
      %v344 = vpop.permute.xlu0 %343
      %345 = vrot.lane.b32.xlu0 %v339, 56
      %v346 = vpop.permute.xlu0 %345
      %347 = vrot.lane.b32.xlu0 %v340, 56
      %v348 = vpop.permute.xlu0 %347
      %v349 = vsel %vm318, %v342, %v344
      %v350 = vsel %vm318, %v344, %v346
      %v351 = vsel %vm318, %v346, %v348
      %355 = vrot.lane.b32.xlu0 %v349, 127
      %v356 = vpop.permute.xlu0 %355
      %357 = vrot.lane.b32.xlu0 %v350, 127
      %v358 = vpop.permute.xlu0 %357
      %359 = vrot.lane.b32.xlu0 %v351, 127
      %v360 = vpop.permute.xlu0 %359
      %v361 = vsel %vm238, %v358, %v360
      %v362 = vsel %vm238, %v356, %v358
      %v363 = vsel %vm238, %v360, %v356
      %s364 = scalar_lea.vmem [#allocation1], 1
      %365 = vst [vmem:[%s364] ss:$2 sm:$0xff] %v173
      %s366 = scalar_lea.vmem [#allocation1], 17
      %367 = vst [vmem:[%s366] ss:$2 sm:$0xff] %v174
      %v368 = vld.sshfl [vmem:[#allocation1] sm:$0xff pattern:$0x75316420]
      %v369 = vld.sshfl [vmem:[#allocation1 + $0x8] sm:$0xff pattern:$0x75316420]
      %v370 = vld.sshfl [vmem:[#allocation1 + $0x10] sm:$0xff pattern:$0x75316420]
      %v371 = vld.sshfl [vmem:[#allocation1 + $0x18] sm:$0xff pattern:$0x75316420]
      %372 = vrot.lane.b32.xlu0 %v368, 104
      %v373 = vpop.permute.xlu0 %372
      %374 = vrot.lane.b32.xlu0 %v369, 104
      %v375 = vpop.permute.xlu0 %374
      %376 = vrot.lane.b32.xlu0 %v370, 104
      %v377 = vpop.permute.xlu0 %376
      %378 = vrot.lane.b32.xlu0 %v371, 104
      %v379 = vpop.permute.xlu0 %378
      %v380 = vsel %vm192, %v373, %v375
      %v381 = vsel %vm192, %v375, %v377
      %v382 = vsel %vm192, %v377, %v379
      %v389 = vrot.slane %v272, 4
      %v390 = vrot.slane %v271, 4
      %v391 = vrot.slane %v270, 4
      %395 = vst [vmem:[#allocation1] ss:$2 sm:$0xff] %v173
      %s396 = scalar_lea.vmem [#allocation1], 16
      %397 = vst [vmem:[%s396] ss:$2 sm:$0xff] %v174
      %v398 = vld.sshfl [vmem:[#allocation1] sm:$0xff pattern:$0x75316420]
      %v399 = vld.sshfl [vmem:[#allocation1 + $0x8] sm:$0xff pattern:$0x75316420]
      %v400 = vld.sshfl [vmem:[#allocation1 + $0x10] sm:$0xff pattern:$0x75316420]
      %v401 = vld.sshfl [vmem:[#allocation1 + $0x18] sm:$0xff pattern:$0x75316420]
      %402 = vrot.lane.b32.xlu0 %v398, 80
      %v403 = vpop.permute.xlu0 %402
      %404 = vrot.lane.b32.xlu0 %v399, 80
      %v405 = vpop.permute.xlu0 %404
      %406 = vrot.lane.b32.xlu0 %v400, 80
      %v407 = vpop.permute.xlu0 %406
      %408 = vrot.lane.b32.xlu0 %v401, 80
      %v409 = vpop.permute.xlu0 %408
      %v410 = vsel %vm257, %v403, %v405
      %v411 = vsel %vm257, %v405, %v407
      %v412 = vsel %vm257, %v407, %v409
      %v419 = vrot.slane %v301, 4
      %v420 = vrot.slane %v300, 4
      %v421 = vrot.slane %v302, 4
      %s425 = scalar_lea.vmem [#allocation1], 1
      %426 = vst [vmem:[%s425] ss:$2 sm:$0xff] %v173
      %s427 = scalar_lea.vmem [#allocation1], 17
      %428 = vst [vmem:[%s427] ss:$2 sm:$0xff] %v174
      %v429 = vld.sshfl [vmem:[#allocation1] sm:$0xff pattern:$0x75316420]
      %v430 = vld.sshfl [vmem:[#allocation1 + $0x8] sm:$0xff pattern:$0x75316420]
      %v431 = vld.sshfl [vmem:[#allocation1 + $0x10] sm:$0xff pattern:$0x75316420]
      %v432 = vld.sshfl [vmem:[#allocation1 + $0x18] sm:$0xff pattern:$0x75316420]
      %433 = vrot.lane.b32.xlu0 %v429, 56
      %v434 = vpop.permute.xlu0 %433
      %435 = vrot.lane.b32.xlu0 %v430, 56
      %v436 = vpop.permute.xlu0 %435
      %437 = vrot.lane.b32.xlu0 %v431, 56
      %v438 = vpop.permute.xlu0 %437
      %439 = vrot.lane.b32.xlu0 %v432, 56
      %v440 = vpop.permute.xlu0 %439
      %v441 = vsel %vm318, %v434, %v436
      %v442 = vsel %vm318, %v436, %v438
      %v443 = vsel %vm318, %v438, %v440
      %vm447 = vcmask 1043456
      %v448 = vsel %vm447, %v210, %v380
      %v449 = vsel %vm447, %v209, %v381
      %v450 = vsel %vm447, %v208, %v382
      %v451 = vsel %vm447, %v240, %v389
      %v452 = vsel %vm447, %v239, %v390
      %v453 = vsel %vm447, %v241, %v391
      %v454 = vsel %vm447, %v410, %v419
      %v455 = vsel %vm447, %v411, %v420
      %v456 = vsel %vm447, %v412, %v421
      %v457 = vsel %vm447, %v333, %v441
      %v458 = vsel %vm447, %v332, %v442
      %v459 = vsel %vm447, %v331, %v443
      %461 = vset.pattern.permute.xlu0 0
      %462 = vperm.xlu0 %461, %v172
      %v463 = vpop.permute.xlu0 %462
      %vm465 = vcmask 293888
      %v467 = vsel %vm465, %v171, 0
      %v470 = vsel %vm447, %v362, 0
      %v473 = vsel %vm447, %v361, 0
      %v476 = vsel %vm447, %v363, 0
      %478 = vmatpush.msra.mxu0 0.0
      %479 = vmatpush.msra.mxu0 0.0
      %480 = vmatpush.msra.mxu0 0.0
      %481 = vmatpush.msra.mxu0 0.0
      %482 = vmatpush.msra.mxu0 0.0
      %483 = vmatpush.msra.mxu0 0.0
      %484 = vmatpush.msra.mxu0 0.0
      %485 = vmatpush.msra.mxu0 0.0
      %486 = vmatpush.msra.mxu0 0.0
      %487 = vmatpush.msra.mxu0 0.0
      %488 = vmatpush.msra.mxu0 0.0
      %489 = vmatpush.msra.mxu0 %v470
      %490 = vmatpush.msra.mxu0 %v457
      %491 = vmatpush.msra.mxu0 %v454
      %492 = vmatpush.msra.mxu0 %v451
      %493 = vmatpush.msra.mxu0 %v448
      %494 = vmatmul.f32.gmra.mxu0 %v467
      %v495 = vpop.f32.mrf.mxu0
      %v496 = vadd.f32 %v463, %v495
      %497 = vdwg.mxu0
      %498 = vmatpush.msra.mxu0 0.0
      %499 = vmatpush.msra.mxu0 0.0
      %500 = vmatpush.msra.mxu0 0.0
      %501 = vmatpush.msra.mxu0 0.0
      %502 = vmatpush.msra.mxu0 0.0
      %503 = vmatpush.msra.mxu0 0.0
      %504 = vmatpush.msra.mxu0 0.0
      %505 = vmatpush.msra.mxu0 0.0
      %506 = vmatpush.msra.mxu0 0.0
      %507 = vmatpush.msra.mxu0 0.0
      %508 = vmatpush.msra.mxu0 0.0
      %509 = vmatpush.msra.mxu0 %v473
      %510 = vmatpush.msra.mxu0 %v458
      %511 = vmatpush.msra.mxu0 %v455
      %512 = vmatpush.msra.mxu0 %v452
      %513 = vmatpush.msra.mxu0 %v449
      %514 = vmatmul.f32.gmra.mxu0 %v467
      %v515 = vpop.f32.mrf.mxu0
      %v516 = vadd.f32 %v463, %v515
      %517 = vdwg.mxu0
      %518 = vmatpush.msra.mxu0 0.0
      %519 = vmatpush.msra.mxu0 0.0
      %520 = vmatpush.msra.mxu0 0.0
      %521 = vmatpush.msra.mxu0 0.0
      %522 = vmatpush.msra.mxu0 0.0
      %523 = vmatpush.msra.mxu0 0.0
      %524 = vmatpush.msra.mxu0 0.0
      %525 = vmatpush.msra.mxu0 0.0
      %526 = vmatpush.msra.mxu0 0.0
      %527 = vmatpush.msra.mxu0 0.0
      %528 = vmatpush.msra.mxu0 0.0
      %529 = vmatpush.msra.mxu0 %v476
      %530 = vmatpush.msra.mxu0 %v459
      %531 = vmatpush.msra.mxu0 %v456
      %532 = vmatpush.msra.mxu0 %v453
      %533 = vmatpush.msra.mxu0 %v450
      %534 = vmatmul.f32.gmra.mxu0 %v467
      %v535 = vpop.f32.mrf.mxu0
      %v536 = vadd.f32 %v463, %v535
      %537 = vdwg.mxu0
      %v538 = vmax.f32 %v496, 0.0
      %v539 = vmax.f32 %v516, 0.0
      %v540 = vmax.f32 %v536, 0.0
      %541 = vst [vmem:[%s170] sm:$0xff] %v538
      %542 = vst [vmem:[%s170 + $0x8] sm:$0xff] %v539
      %543 = vst [vmem:[%s170 + $0x10] sm:$0xff] %v540
      %p544 = scmp.lt.s32.totalorder %s14, 1
      %s545 = scalar_select %p544, %s14, 1
      %s546 = smul.addr %s545, 3
      %s547 = smul.addr %s546, 8
      %s548 = scalar_lea.vmem %s3, %s547
      // Predicated region
      $region33: #{ann_layer_conv_relu.1} parent=31 // pred_check
        %p549 = pneg %p100
      $region34: #{ann_layer_conv_relu.1} parent=31 // pred_check_branch
        %551 = sbr.rel (%p549) target = $region36
      $region35: #{ann_layer_conv_relu.1} parent=31 // pred_region
        _
      $region36: #{ann_layer_conv_relu.1} parent=31 // pred_fallthru
        _
    $region32: #{ann_layer_conv_relu.1} parent=5 // pred_fallthru
      _
    %p552 = scmp.le.s32.totalorder 2, %s9
    // Predicated region
    $region37: #{ann_layer_conv_relu.1} parent=5 // pred_check
      %p553 = pneg %p552
    $region38: #{ann_layer_conv_relu.1} parent=5 // pred_check_branch
      %555 = sbr.rel (%p553) target = $region40
    $region39: #{ann_layer_conv_relu.1} parent=5 // pred_region
      %s556 = ssub.s32 %s9, 2
      // Predicated region
      $region41: #{ann_layer_conv_relu.1} parent=39 // pred_check
        %p557 = pneg %p106
      $region42: #{ann_layer_conv_relu.1} parent=39 // pred_check_branch
        %559 = sbr.rel (%p557) target = $region44
      $region43: #{ann_layer_conv_relu.1} parent=39 // pred_region
        %p560 = scmp.lt.s32.totalorder %s15, 1
        %s561 = scalar_select %p560, %s15, 1
        %s562 = smul.addr %s561, 3
        %s563 = smul.addr %s562, 8
        %s564 = scalar_lea.vmem %s3, %s563
      $region44: #{ann_layer_conv_relu.1} parent=39 // pred_fallthru
        _
    $region40: #{ann_layer_conv_relu.1} parent=5 // pred_fallthru
      _
  $region6: #{ann_layer_conv_relu.1} parent=0 // loop_footer
    %s13 = sadd.s32 1, %s9
  $region7: #{ann_layer_conv_relu.1} parent=0 // loop_footer_branch
    %8 = sbr.rel target = $region3
  $region8: #{ann_layer_conv_relu.1} parent=0 // loop_exit
    _

</llo_original>
